<compile_context>
chip_gen: v5e
topology: v5e:2x2
jax: 0.10.0
libtpu: 0.0.40
codegen_flags: <defaults>
</compile_context>

<pallas_src>
import functools

import jax
import jax.numpy as jnp
from jax.experimental import pallas as pl
from jax.experimental.pallas import tpu as pltpu


def mlp_kernel(xt_ref, w1_ref, b1_ref, w2_ref, b2_ref, out_ref):
    # xt_ref: (5, TB)   w1_ref: (8, 5)   b1_ref: (8, 1)
    # w2_ref: (2, 8)    b2_ref: (2, 1)   out_ref: (2, TB)
    h = jnp.dot(w1_ref[...], xt_ref[...],
                preferred_element_type=jnp.float32)            # (8, TB)
    h = jnp.maximum(h + b1_ref[...], 0.0)                      # Linear(5,8)+ReLU
    # stack((h,h),dim=1)[:,1:3].flatten(1) == h ; 2nd ReLU idempotent -> dropped
    y = jnp.dot(w2_ref[...], h,
                preferred_element_type=jnp.float32)            # (2, TB)
    out_ref[...] = (y + b2_ref[...]).astype(out_ref.dtype)     # Linear(8,2)


def _round_up(v, m):
    return ((v + m - 1) // m) * m


def _pallas_forward(x, w1, b1, w2, b2, *, max_tile=4096):
    """x: (B, 5); w1: (8, 5); b1: (8,); w2: (2, 8); b2: (2,) -> (B, 2)."""
    B, F_in = x.shape
    F_out = w2.shape[0]

    # Batch-in-lanes layout: transpose activations so batch is the lane axis.
    xt = x.T                                   # (5, B)
    b1c = b1.reshape(F_in + 3, 1) if False else b1.reshape(-1, 1)   # (8, 1)
    b2c = b2.reshape(-1, 1)                                          # (2, 1)

    # Batch tile:
    #  * tiny batch -> single full-batch block (block == full dim is legal).
    #  * larger batch -> lane-aligned (multiple of 128) tile, capped at
    #    max_tile, and sized so the grid has >= 2 steps (both v7x TCs busy).
    if B <= 256:
        TB = B
    else:
        TB = min(_round_up(pl.cdiv(B, 2), 128), (max_tile // 128) * 128)
    grid = (pl.cdiv(B, TB),)

    # Weights/biases: full-array blocks, VMEM-resident across all grid steps.
    resident = lambda arr: pl.BlockSpec(arr.shape, lambda i: (0, 0))

    out_t = pl.pallas_call(
        mlp_kernel,
        out_shape=jax.ShapeDtypeStruct((F_out, B), jnp.float32),
        grid=grid,
        in_specs=[
            pl.BlockSpec((F_in, TB), lambda i: (0, i)),   # x^T: blocked over batch lanes
            resident(w1),
            resident(b1c),
            resident(w2),
            resident(b2c),
        ],
        out_specs=pl.BlockSpec((F_out, TB), lambda i: (0, i)),   # lane-dense (2, TB)
        compiler_params=pltpu.CompilerParams(
            dimension_semantics=("parallel",),
        ),
    )(xt, w1, b1c, w2, b2c)

    return out_t.T                              # back to (B, 2)


def model_forward(x, w1, b1, w2, b2, *, max_tile=4096,
                  small_batch_threshold=1024, force_pallas=False):
    """Dispatch: tiny batches are best left to XLA fusion; large ones use Pallas."""
    B = x.shape[0]
    if (B < small_batch_threshold) and not force_pallas:
        h = jnp.maximum(x @ w1.T + b1, 0.0)
        return h @ w2.T + b2
    return _pallas_forward(x, w1, b1, w2, b2, max_tile=max_tile)


if __name__ == "__main__":
    key = jax.random.PRNGKey(0)
    kx, kw1, kb1, kw2, kb2 = jax.random.split(key, 5)

    # Input: matches torch.randn(2, 5)
    x = jax.random.normal(kx, (2, 5), dtype=jnp.float32)

    # Deterministic parameter init, PyTorch nn.Linear layout: weight (out, in).
    w1 = jax.random.uniform(kw1, (8, 5), jnp.float32, -1.0, 1.0) / jnp.sqrt(5.0)
    b1 = jax.random.uniform(kb1, (8,), jnp.float32, -1.0, 1.0) / jnp.sqrt(5.0)
    w2 = jax.random.uniform(kw2, (2, 8), jnp.float32, -1.0, 1.0) / jnp.sqrt(8.0)
    b2 = jax.random.uniform(kb2, (2,), jnp.float32, -1.0, 1.0) / jnp.sqrt(8.0)

    # Force the Pallas path so the kernel is actually exercised at B=2.
    fwd = functools.partial(model_forward, force_pallas=True)
    out = jax.block_until_ready(fwd(x, w1, b1, w2, b2))

    # Reference in plain JAX, including the explicit stack/slice/flatten + 2nd ReLU.
    h = jnp.maximum(x @ w1.T + b1, 0.0)
    h = jnp.stack((h, h), axis=1)[:, 1:3].reshape(x.shape[0], -1)
    h = jnp.maximum(h, 0.0)
    ref = h @ w2.T + b2

    assert out.shape == (2, 2)
    assert jnp.allclose(out, ref, atol=1e-5, rtol=1e-5)

    print("KERNEL_OK")
</pallas_src>

<mosaic_0001>
module attributes {stable_mosaic.version = 11 : i64} {
  func.func @mlp_kernel(%arg0: i32, %arg1: memref<5x2xf32, #tpu.memory_space<vmem>>, %arg2: memref<8x5xf32, #tpu.memory_space<vmem>>, %arg3: memref<8x1xf32, #tpu.memory_space<vmem>>, %arg4: memref<2x8xf32, #tpu.memory_space<vmem>>, %arg5: memref<2x1xf32, #tpu.memory_space<vmem>>, %arg6: memref<2x2xf32, #tpu.memory_space<vmem>>) attributes {dimension_semantics = [#tpu.dimension_semantics<parallel>], iteration_bounds = array<i64: 1>, scalar_prefetch = 0 : i64, scratch_operands = 0 : i64, tpu.core_type = #tpu.core_type<tc>, window_params = [{transform_indices = @transform_0, window_bounds = array<i64: 5, 2>}, {pipeline_mode = #tpu.pipeline_mode<synchronous>, transform_indices = @transform_1, window_bounds = array<i64: 8, 5>}, {pipeline_mode = #tpu.pipeline_mode<synchronous>, transform_indices = @transform_2, window_bounds = array<i64: 8, 1>}, {pipeline_mode = #tpu.pipeline_mode<synchronous>, transform_indices = @transform_3, window_bounds = array<i64: 2, 8>}, {pipeline_mode = #tpu.pipeline_mode<synchronous>, transform_indices = @transform_4, window_bounds = array<i64: 2, 1>}, {transform_indices = @transform_5, window_bounds = array<i64: 2, 2>}]} {
    %c0 = arith.constant 0 : index
    %c0_0 = arith.constant 0 : index
    %0 = vector.load %arg2[%c0, %c0_0] : memref<8x5xf32, #tpu.memory_space<vmem>>, vector<8x5xf32>
    %c0_1 = arith.constant 0 : index
    %c0_2 = arith.constant 0 : index
    %1 = vector.load %arg1[%c0_1, %c0_2] : memref<5x2xf32, #tpu.memory_space<vmem>>, vector<5x2xf32>
    %cst = arith.constant dense<0.000000e+00> : vector<8x2xf32>
    %2 = tpu.matmul %0, %1, %cst {dimension_numbers = #tpu.dot_dimension_numbers<[1], [0], [0], [1], [0, 0, 1, 1], [], []>} : vector<8x5xf32>, vector<5x2xf32>, vector<8x2xf32> -> vector<8x2xf32>
    %c0_3 = arith.constant 0 : index
    %c0_4 = arith.constant 0 : index
    %3 = vector.load %arg3[%c0_3, %c0_4] : memref<8x1xf32, #tpu.memory_space<vmem>>, vector<8x1xf32>
    %4 = vector.broadcast %3 : vector<8x1xf32> to vector<8x2xf32>
    %5 = arith.addf %2, %4 : vector<8x2xf32>
    %cst_5 = arith.constant 0.000000e+00 : f32
    %6 = vector.broadcast %cst_5 : f32 to vector<8x2xf32>
    %7 = arith.maximumf %5, %6 : vector<8x2xf32>
    %c0_6 = arith.constant 0 : index
    %c0_7 = arith.constant 0 : index
    %8 = vector.load %arg4[%c0_6, %c0_7] : memref<2x8xf32, #tpu.memory_space<vmem>>, vector<2x8xf32>
    %cst_8 = arith.constant dense<0.000000e+00> : vector<2x2xf32>
    %9 = tpu.matmul %8, %7, %cst_8 {dimension_numbers = #tpu.dot_dimension_numbers<[1], [0], [0], [1], [0, 0, 1, 1], [], []>} : vector<2x8xf32>, vector<8x2xf32>, vector<2x2xf32> -> vector<2x2xf32>
    %c0_9 = arith.constant 0 : index
    %c0_10 = arith.constant 0 : index
    %10 = vector.load %arg5[%c0_9, %c0_10] : memref<2x1xf32, #tpu.memory_space<vmem>>, vector<2x1xf32>
    %11 = vector.broadcast %10 : vector<2x1xf32> to vector<2x2xf32>
    %12 = arith.addf %9, %11 : vector<2x2xf32>
    %c0_11 = arith.constant 0 : index
    %c0_12 = arith.constant 0 : index
    %13 = vector.load %arg6[%c0_11, %c0_12] : memref<2x2xf32, #tpu.memory_space<vmem>>, vector<2x2xf32>
    tpu.vector_store %arg6[%c0_11, %c0_12], %12 {strides = array<i32>} : memref<2x2xf32, #tpu.memory_space<vmem>>, vector<2x2xf32>,
    return
  }
  func.func @transform_0(%arg0: i32) -> (i32, i32) {
    %c0_i32 = arith.constant 0 : i32
    %c0_i32_0 = arith.constant 0 : i32
    return %c0_i32, %arg0 : i32, i32
  }
  func.func @transform_1(%arg0: i32) -> (i32, i32) {
    %c0_i32 = arith.constant 0 : i32
    %c0_i32_0 = arith.constant 0 : i32
    %c0_i32_1 = arith.constant 0 : i32
    return %c0_i32, %c0_i32_0 : i32, i32
  }
  func.func @transform_2(%arg0: i32) -> (i32, i32) {
    %c0_i32 = arith.constant 0 : i32
    %c0_i32_0 = arith.constant 0 : i32
    %c0_i32_1 = arith.constant 0 : i32
    return %c0_i32, %c0_i32_0 : i32, i32
  }
  func.func @transform_3(%arg0: i32) -> (i32, i32) {
    %c0_i32 = arith.constant 0 : i32
    %c0_i32_0 = arith.constant 0 : i32
    %c0_i32_1 = arith.constant 0 : i32
    return %c0_i32, %c0_i32_0 : i32, i32
  }
  func.func @transform_4(%arg0: i32) -> (i32, i32) {
    %c0_i32 = arith.constant 0 : i32
    %c0_i32_0 = arith.constant 0 : i32
    %c0_i32_1 = arith.constant 0 : i32
    return %c0_i32, %c0_i32_0 : i32, i32
  }
  func.func @transform_5(%arg0: i32) -> (i32, i32) {
    %c0_i32 = arith.constant 0 : i32
    %c0_i32_0 = arith.constant 0 : i32
    return %c0_i32, %arg0 : i32, i32
  }
}

</mosaic_0001>

<llo_original>
// kernel: tpu_custom_call.1
$region0: #{tpu_custom_call.1}
  #allocation0 [shape = 'u32[]', space=smem, size = 0x4, offset = 0x4, fixed_abs, tag = 'smem constant byte address 0x4 - core index']
  #allocation1 [shape = 'u32[72,128]{1,0:T(1,128)}', space=vmem, size = 0x9000, scoped, tag = 'internal scratch']
  %s0 = inlined_call_operand.vmem [shape: f32[5,2], index: 0, kind: input, shape index: {}]
  %s1 = inlined_call_operand.vmem [shape: f32[8,5], index: 1, kind: input, shape index: {}]
  %s2 = inlined_call_operand.vmem [shape: f32[8,1], index: 2, kind: input, shape index: {}]
  %s3 = inlined_call_operand.vmem [shape: f32[2,8], index: 3, kind: input, shape index: {}]
  %s4 = inlined_call_operand.vmem [shape: f32[2,1], index: 4, kind: input, shape index: {}]
  %s5 = inlined_call_operand.hbm [shape: f32[2,2], index: 5, kind: output, shape index: {}]
  %s6 = sld [smem:[#allocation0]]
  $region30: #{tpu_custom_call.1} parent=0
    _
  %s8 = ssub.s32 1, %s6
  %s9 = scalar_select 0, %s8, %s6
  $region1: #{tpu_custom_call.1} parent=0
    #allocation2 [shape = 'u8[1024]{0}', space=vmem, size = 0x400, scoped, tag = 'output window, operand 0, single buffered']
    #allocation3 [shape = 's32[1]{0}', space=sflag, size = 0x4, scoped, tag = 'scoped memory for tpu_custom_call.1']
    %10 = vsyncpa [#allocation3], 0
    // Predicated region
    $region2: #{tpu_custom_call.1} parent=1 // pred_check
      _
    $region3: #{tpu_custom_call.1} parent=1 // pred_check_branch
      %12 = sbr.rel (0) target = $region5
    $region4: #{tpu_custom_call.1} parent=1 // pred_region
      _
    $region5: #{tpu_custom_call.1} parent=1 // pred_fallthru
      _
    // Predicated region
    $region6: #{tpu_custom_call.1} parent=1 // pred_check
      _
    $region7: #{tpu_custom_call.1} parent=1 // pred_check_branch
      %14 = sbr.rel (0) target = $region9
    $region8: #{tpu_custom_call.1} parent=1 // pred_region
      _
    $region9: #{tpu_custom_call.1} parent=1 // pred_fallthru
      _
    // Predicated region
    $region10: #{tpu_custom_call.1} parent=1 // pred_check
      _
    $region11: #{tpu_custom_call.1} parent=1 // pred_check_branch
      %16 = sbr.rel (0) target = $region13
    $region12: #{tpu_custom_call.1} parent=1 // pred_region
      _
    $region13: #{tpu_custom_call.1} parent=1 // pred_fallthru
      _
    // Predicated region
    $region14: #{tpu_custom_call.1} parent=1 // pred_check
      _
    $region15: #{tpu_custom_call.1} parent=1 // pred_check_branch
      %18 = sbr.rel (0) target = $region17
    $region16: #{tpu_custom_call.1} parent=1 // pred_region
      _
    $region17: #{tpu_custom_call.1} parent=1 // pred_fallthru
      _
    // Predicated region
    $region18: #{tpu_custom_call.1} parent=1 // pred_check
      _
    $region19: #{tpu_custom_call.1} parent=1 // pred_check_branch
      %20 = sbr.rel (0) target = $region21
    $region20: #{tpu_custom_call.1} parent=1 // pred_region
      _
    $region21: #{tpu_custom_call.1} parent=1 // pred_fallthru
      _
    %v21 = vld [vmem:[%s1] sm:$0xff]
    %v22 = vld [vmem:[%s0] sm:$0x1f]
    %v23 = vld [vmem:[%s2] sm:$0xff]
    %25 = vset.pattern.permute.xlu0 0
    %26 = vperm.xlu0 %25, %v23
    %v27 = vpop.permute.xlu0 %26
    %vm29 = vcmask 39936
    %v31 = vsel %vm29, %v21, 0
    %vm33 = vcmask 1044480
    %v35 = vsel %vm33, %v22, 0
    %37 = vmatpush.msra.mxu0 0.0
    %38 = vmatpush.msra.mxu0 0.0
    %39 = vmatpush.msra.mxu0 0.0
    %40 = vmatpush.msra.mxu0 0.0
    %41 = vmatpush.msra.mxu0 0.0
    %42 = vmatpush.msra.mxu0 0.0
    %43 = vmatpush.msra.mxu0 0.0
    %44 = vmatpush.msra.mxu0 0.0
    %45 = vmatpush.msra.mxu0 0.0
    %46 = vmatpush.msra.mxu0 0.0
    %47 = vmatpush.msra.mxu0 0.0
    %48 = vmatpush.msra.mxu0 0.0
    %49 = vmatpush.msra.mxu0 0.0
    %50 = vmatpush.msra.mxu0 0.0
    %51 = vmatpush.msra.mxu0 0.0
    %52 = vmatpush.msra.mxu0 %v35
    %53 = vmatmul.f32.gmra.mxu0 %v31
    %v54 = vpop.f32.mrf.mxu0
    %v55 = vadd.f32 %v27, %v54
    %56 = vdwg.mxu0
    %v57 = vmax.f32 %v55, 0.0
    %v58 = vld [vmem:[%s3] sm:$0x3]
    %v59 = vld [vmem:[%s4] sm:$0x3]
    %61 = vset.pattern.permute.xlu0 0
    %62 = vperm.xlu0 %61, %v59
    %v63 = vpop.permute.xlu0 %62
    %vm65 = vcmask 64512
    %v67 = vsel %vm65, %v58, 0
    %69 = vmatpush.msra.mxu0 0.0
    %70 = vmatpush.msra.mxu0 0.0
    %71 = vmatpush.msra.mxu0 0.0
    %72 = vmatpush.msra.mxu0 0.0
    %73 = vmatpush.msra.mxu0 0.0
    %74 = vmatpush.msra.mxu0 0.0
    %75 = vmatpush.msra.mxu0 0.0
    %76 = vmatpush.msra.mxu0 0.0
    %77 = vmatpush.msra.mxu0 0.0
    %78 = vmatpush.msra.mxu0 0.0
    %79 = vmatpush.msra.mxu0 0.0
    %80 = vmatpush.msra.mxu0 0.0
    %81 = vmatpush.msra.mxu0 0.0
    %82 = vmatpush.msra.mxu0 0.0
    %83 = vmatpush.msra.mxu0 0.0
    %84 = vmatpush.msra.mxu0 %v57
    %85 = vmatmul.f32.gmra.mxu0 %v67
    %v86 = vpop.f32.mrf.mxu0
    %v87 = vadd.f32 %v63, %v86
    %88 = vdwg.mxu0
    %vm89 = vcmask 9216
    %90 = vst.msk [vmem:[#allocation2] sm:$0x3] %vm89, %v87
    // Predicated region
    $region22: #{tpu_custom_call.1} parent=1 // pred_check
      _
    $region23: #{tpu_custom_call.1} parent=1 // pred_check_branch
      %92 = sbr.rel (0) target = $region25
    $region24: #{tpu_custom_call.1} parent=1 // pred_region
      %94 = vsyncadd [#allocation3], 0
      %s96 = sshll.u32 [#allocation2], 4
      %s97 = int_to_ptr.vmem [resolvable:$true] %s96
      %s98 = sshll.u32 %s5, 4
      %s99 = int_to_ptr.hbm [resolvable:$true] %s98
      %101 = dma.vmem_to_hbm [thread:$0]  %s97, 32, %s99, [#allocation3]
    $region25: #{tpu_custom_call.1} parent=1 // pred_fallthru
      _
    // Predicated region
    $region26: #{tpu_custom_call.1} parent=1 // pred_check
      _
    $region27: #{tpu_custom_call.1} parent=1 // pred_check_branch
      %103 = sbr.rel (0) target = $region29
    $region28: #{tpu_custom_call.1} parent=1 // pred_region
      %105 = dma.done [#allocation3], 32
    $region29: #{tpu_custom_call.1} parent=1 // pred_fallthru
      _
    %106 = vsyncpa [#allocation3], 1

</llo_original>
